<compile_context>
chip_gen: v7x
topology: tpu7x:2x2x1
jax: 0.10.0
libtpu: 0.0.40
codegen_flags: <defaults>
</compile_context>

<pallas_src>
import math

import jax
import jax.numpy as jnp
from jax.experimental import pallas as pl
from jax.experimental.pallas import tpu as pltpu


def _round_up(x: int, m: int) -> int:
    return ((x + m - 1) // m) * m


def _make_outconv_kernel(kh_sz: int, kw8: int, w_pad: int, delta: int):
    """One grid step = Nb batch elements, concatenated on the lane axis.

    x_ref : (1, C, LSLAB)      bf16  — Nb flattened (H, W_pad) slabs side by side
    w_ref : (KH*KW8, C)        bf16  — BN-folded weights; inside each kh block,
                                       row j holds tap kw = KW8-1-j (zero-padded front)
    b_ref : (1, 1)  f32 SMEM         — folded conv bias + BN shift
    o_ref : (1, 1, LSLAB)      f32   — per element, valid outputs at lanes
                                       [delta, delta + H_out*W_pad)
    """

    def kernel(x_ref, w_ref, b_ref, o_ref):
        x = x_ref[0]                                               # (C, LSLAB) bf16
        # Single MXU contraction over C for all KH*KW taps at once.
        t = jnp.dot(w_ref[...], x, preferred_element_type=jnp.float32)  # (KH*KW8, LSLAB)
        y = None
        for kh in range(kh_sz):
            blk = t[kh * kw8:(kh + 1) * kw8]                       # sublane-aligned slice
            # Row j of this block needs: out[q] += blk[j, q - delta + off],
            # off = kh*w_pad + (kw8-1-j)  =>  lane roll by  delta - off = base + j.
            base = delta - kh * w_pad - (kw8 - 1)                  # >= 0, max shift = delta
            rolled = pltpu.roll(blk, base, 1, stride=1, stride_axis=0)
            part = jnp.sum(rolled, axis=0, keepdims=True)          # XLU sublane reduce
            y = part if y is None else y + part
        y = y + b_ref[0, 0]                                        # folded bias
        o_ref[0] = jnp.maximum(y, 0.0).astype(o_ref.dtype)         # fused ReLU epilogue

    return kernel


def outconv2d_forward(x, conv_w, conv_b, bn_gamma, bn_beta, bn_mean, bn_var,
                      *, eps=1e-5, batch_per_step=None):
    """OutConv2d forward: Conv2d(ker=(2,31), pad=(0,15), stride=1) + BN(eval) + ReLU.

    x: (N, C_in, H, W) f32; conv_w: (1, C_in, KH, KW); conv_b/bn_*: (1,)
    Returns (N, 1, H-KH+1, W) f32.
    """
    n, c, h, w = x.shape
    out_ch, c_w, kh_sz, kw_sz = conv_w.shape
    assert out_ch == 1 and c_w == c, "kernel specialized for out_ch == 1"

    pad_w = (kw_sz - 1) // 2
    w_pad = w + 2 * pad_w
    h_out = h - kh_sz + 1
    w_out = w_pad - kw_sz + 1                      # == w for this padding scheme
    out_flat = h_out * w_pad
    kw8 = _round_up(kw_sz, 8)
    # Lane offset of the first valid output inside each element's slab; chosen so every
    # roll amount (delta - tap_offset) is in [0, delta], i.e. never negative / >= size.
    delta = (kh_sz - 1) * w_pad + (kw8 - 1)
    xflat = _round_up(max(h * w_pad, out_flat + delta), 128)   # lane-dense per-element slab

    # ---- Fold inference-mode BatchNorm into the conv weight/bias (out_ch == 1). ----
    # TODO(synk): training-mode BatchNorm (batch statistics) is not implemented; this
    # folds the eval-mode running stats.
    scale = bn_gamma / jnp.sqrt(bn_var + eps)                          # (1,)
    w_eff = conv_w[0].astype(jnp.float32) * scale[0]                   # (C, KH, KW)
    b_eff = (conv_b - bn_mean) * scale + bn_beta                       # (1,)
    # Pack as (KH*KW8, C): inside each kh block, row j holds kw = KW8-1-j (zeros in front).
    w_rev = w_eff[:, :, ::-1]                                          # reverse kw
    w_rev = jnp.pad(w_rev, ((0, 0), (0, 0), (kw8 - kw_sz, 0)))         # (C, KH, KW8)
    w_pack = jnp.transpose(w_rev, (1, 2, 0)).reshape(kh_sz * kw8, c)   # (KH*KW8, C)
    w_pack = w_pack.astype(jnp.bfloat16)
    b_k = jnp.reshape(b_eff, (1, 1)).astype(jnp.float32)

    # ---- Batch grouping: Nb elements per grid step, concatenated on the lane axis. ----
    if batch_per_step is None:
        max_nb = max(1, (768 * 1024) // (c * xflat * 2))     # ~0.75 MiB bf16 x-slab / step
        nb = max(1, min(max_nb, -(-n // 2))) if n >= 2 else 1  # keep >=2 steps (v7x: 2 TCs)
    else:
        nb = max(1, int(batch_per_step))
    g = -(-n // nb)                                           # ceil-div
    n_padded = g * nb

    # Layout: conv zero-pad on W, flatten (H, W_pad) onto lanes, pad lanes to XFLAT,
    # pad batch to a multiple of Nb, then place Nb slabs side by side on the lane axis.
    xp = jnp.pad(x.astype(jnp.float32), ((0, 0), (0, 0), (0, 0), (pad_w, pad_w)))
    x_flat = xp.reshape(n, c, h * w_pad)
    x_flat = jnp.pad(x_flat, ((0, 0), (0, 0), (0, xflat - h * w_pad)))
    x_flat = jnp.pad(x_flat, ((0, n_padded - n), (0, 0), (0, 0)))
    x_grp = (x_flat.reshape(g, nb, c, xflat)
             .transpose(0, 2, 1, 3)
             .reshape(g, c, nb * xflat)
             .astype(jnp.bfloat16))

    lslab = nb * xflat
    kernel = _make_outconv_kernel(kh_sz, kw8, w_pad, delta)

    flops = 2 * n * c * kh_sz * kw_sz * h_out * w_out          # true conv FLOPs
    bytes_accessed = (x_grp.size * 2 + w_pack.size * 2 + b_k.size * 4 + g * lslab * 4)

    out_grp = pl.pallas_call(
        kernel,
        out_shape=jax.ShapeDtypeStruct((g, 1, lslab), jnp.float32),
        grid=(g,),
        in_specs=[
            pl.BlockSpec((1, c, lslab), lambda i: (i, 0, 0)),
            pl.BlockSpec((kh_sz * kw8, c), lambda i: (0, 0)),
            pl.BlockSpec(memory_space=pltpu.MemorySpace.SMEM),
        ],
        out_specs=pl.BlockSpec((1, 1, lslab), lambda i: (i, 0, 0)),
        compiler_params=pltpu.CompilerParams(
            dimension_semantics=("parallel",)),
        cost_estimate=pl.CostEstimate(
            flops=flops, transcendentals=0, bytes_accessed=bytes_accessed),
    )(x_grp, w_pack, b_k)

    # Crop: valid lanes are [delta, delta + out_flat) inside each element's slab; the
    # remaining lanes are conv halo / batch-padding garbage and are discarded here.
    out_slab = out_grp.reshape(n_padded, xflat)[:n, delta:delta + out_flat]
    out = out_slab.reshape(n, 1, h_out, w_pad)[:, :, :, :w_out]
    return out


def outconv2d_reference(x, conv_w, conv_b, bn_gamma, bn_beta, bn_mean, bn_var,
                        eps=1e-5):
    """Pure-JAX reference: conv + inference-mode BN + ReLU."""
    pad_w = (conv_w.shape[3] - 1) // 2
    y = jax.lax.conv_general_dilated(
        x, conv_w, window_strides=(1, 1),
        padding=((0, 0), (pad_w, pad_w)),
        dimension_numbers=("NCHW", "OIHW", "NCHW"),
        precision=jax.lax.Precision.HIGHEST)
    y = y + conv_b.reshape(1, -1, 1, 1)
    y = (y - bn_mean.reshape(1, -1, 1, 1)) / jnp.sqrt(bn_var.reshape(1, -1, 1, 1) + eps)
    y = y * bn_gamma.reshape(1, -1, 1, 1) + bn_beta.reshape(1, -1, 1, 1)
    return jnp.maximum(y, 0.0)


if __name__ == "__main__":
    key = jax.random.PRNGKey(0)
    k_x, k_w, k_b, k_g, k_be, k_m, k_v = jax.random.split(key, 7)

    N, C_IN, H, W = 2, 64, 16, 16
    OUT_CH, KH, KW = 1, 2, 31

    x = jax.random.normal(k_x, (N, C_IN, H, W), dtype=jnp.float32)
    conv_w = jax.random.normal(k_w, (OUT_CH, C_IN, KH, KW), dtype=jnp.float32)
    conv_w = conv_w / math.sqrt(C_IN * KH * KW)
    conv_b = 0.1 * jax.random.normal(k_b, (OUT_CH,), dtype=jnp.float32)
    bn_gamma = 1.0 + 0.1 * jax.random.normal(k_g, (OUT_CH,), dtype=jnp.float32)
    bn_beta = 0.1 * jax.random.normal(k_be, (OUT_CH,), dtype=jnp.float32)
    bn_mean = 0.1 * jax.random.normal(k_m, (OUT_CH,), dtype=jnp.float32)
    bn_var = 1.0 + 0.1 * jax.random.uniform(k_v, (OUT_CH,), dtype=jnp.float32)

    fwd = jax.jit(outconv2d_forward)
    y = jax.block_until_ready(fwd(x, conv_w, conv_b, bn_gamma, bn_beta, bn_mean, bn_var))

    ref = jax.block_until_ready(
        outconv2d_reference(x, conv_w, conv_b, bn_gamma, bn_beta, bn_mean, bn_var))

    assert y.shape == (N, OUT_CH, H - KH + 1, W), y.shape
    assert y.dtype == jnp.float32, y.dtype
    max_err = float(jnp.max(jnp.abs(y - ref)))
    assert jnp.allclose(y, ref, atol=3e-2, rtol=3e-2), f"max abs err {max_err}"

    print("KERNEL_OK")
</pallas_src>

<mosaic_0001>
module attributes {stable_mosaic.version = 11 : i64} {
  func.func @kernel(%arg0: i32, %arg1: memref<1x64x768xbf16, #tpu.memory_space<vmem>>, %arg2: memref<64x64xbf16, #tpu.memory_space<vmem>>, %arg3: memref<1x1xf32, #tpu.memory_space<smem>>, %arg4: memref<1x1x768xf32, #tpu.memory_space<vmem>>) attributes {dimension_semantics = [#tpu.dimension_semantics<parallel>], iteration_bounds = array<i64: 2>, scalar_prefetch = 0 : i64, scratch_operands = 0 : i64, tpu.core_type = #tpu.core_type<tc>, window_params = [{transform_indices = @transform_0, window_bounds = array<i64: 1, 64, 768>}, {pipeline_mode = #tpu.pipeline_mode<synchronous>, transform_indices = @transform_1, window_bounds = array<i64: 64, 64>}, {transform_indices = @transform_2, window_bounds = array<i64: 1, 1>}, {transform_indices = @transform_3, window_bounds = array<i64: 1, 1, 768>}]} {
    %c0 = arith.constant 0 : index
    %c0_0 = arith.constant 0 : index
    %c0_1 = arith.constant 0 : index
    %0 = vector.load %arg1[%c0, %c0_0, %c0_1] : memref<1x64x768xbf16, #tpu.memory_space<vmem>>, vector<1x64x768xbf16>
    %1 = vector.shape_cast %0 : vector<1x64x768xbf16> to vector<64x768xbf16>
    %c0_2 = arith.constant 0 : index
    %c0_3 = arith.constant 0 : index
    %2 = vector.load %arg2[%c0_2, %c0_3] : memref<64x64xbf16, #tpu.memory_space<vmem>>, vector<64x64xbf16>
    %cst = arith.constant dense<0.000000e+00> : vector<64x768xf32>
    %3 = tpu.matmul %2, %1, %cst {dimension_numbers = #tpu.dot_dimension_numbers<[1], [0], [0], [1], [0, 0, 1, 1], [], []>} : vector<64x64xbf16>, vector<64x768xbf16>, vector<64x768xf32> -> vector<64x768xf32>
    %4 = vector.extract_strided_slice %3 {offsets = [0, 0], sizes = [32, 768], strides = [1, 1]} : vector<64x768xf32> to vector<32x768xf32>
    %c46_i32 = arith.constant 46 : i32
    %5 = tpu.dynamic_rotate %4 by %c46_i32 dim 1 {stride = 1 : si32, stride_dimension = 0 : si32} : vector<32x768xf32>, i32 -> vector<32x768xf32>
    %cst_4 = arith.constant dense<0.000000e+00> : vector<768xf32>
    %6 = vector.multi_reduction <add>, %5, %cst_4 [0] : vector<32x768xf32> to vector<768xf32>
    %7 = vector.shape_cast %6 : vector<768xf32> to vector<1x768xf32>
    %8 = vector.extract_strided_slice %3 {offsets = [32, 0], sizes = [32, 768], strides = [1, 1]} : vector<64x768xf32> to vector<32x768xf32>
    %c0_i32 = arith.constant 0 : i32
    %9 = tpu.dynamic_rotate %8 by %c0_i32 dim 1 {stride = 1 : si32, stride_dimension = 0 : si32} : vector<32x768xf32>, i32 -> vector<32x768xf32>
    %cst_5 = arith.constant dense<0.000000e+00> : vector<768xf32>
    %10 = vector.multi_reduction <add>, %9, %cst_5 [0] : vector<32x768xf32> to vector<768xf32>
    %11 = vector.shape_cast %10 : vector<768xf32> to vector<1x768xf32>
    %12 = arith.addf %7, %11 : vector<1x768xf32>
    %c0_6 = arith.constant 0 : index
    %c0_7 = arith.constant 0 : index
    %13 = memref.load %arg3[%c0_6, %c0_7] : memref<1x1xf32, #tpu.memory_space<smem>>
    %14 = vector.broadcast %13 : f32 to vector<1x768xf32>
    %15 = arith.addf %12, %14 : vector<1x768xf32>
    %cst_8 = arith.constant 0.000000e+00 : f32
    %16 = vector.broadcast %cst_8 : f32 to vector<1x768xf32>
    %17 = arith.maximumf %15, %16 : vector<1x768xf32>
    %c0_9 = arith.constant 0 : index
    %c0_10 = arith.constant 0 : index
    %c0_11 = arith.constant 0 : index
    %18 = vector.load %arg4[%c0_9, %c0_10, %c0_11] : memref<1x1x768xf32, #tpu.memory_space<vmem>>, vector<1x1x768xf32>
    %19 = vector.shape_cast %18 : vector<1x1x768xf32> to vector<1x768xf32>
    %20 = vector.shape_cast %17 : vector<1x768xf32> to vector<1x1x768xf32>
    tpu.vector_store %arg4[%c0_9, %c0_10, %c0_11], %20 {strides = array<i32>} : memref<1x1x768xf32, #tpu.memory_space<vmem>>, vector<1x1x768xf32>,
    return
  }
  func.func @transform_0(%arg0: i32) -> (i32, i32, i32) {
    %c0_i32 = arith.constant 0 : i32
    %c0_i32_0 = arith.constant 0 : i32
    %c0_i32_1 = arith.constant 0 : i32
    return %arg0, %c0_i32, %c0_i32_0 : i32, i32, i32
  }
  func.func @transform_1(%arg0: i32) -> (i32, i32) {
    %c0_i32 = arith.constant 0 : i32
    %c0_i32_0 = arith.constant 0 : i32
    %c0_i32_1 = arith.constant 0 : i32
    return %c0_i32, %c0_i32_0 : i32, i32
  }
  func.func @transform_2(%arg0: i32) -> (i32, i32) {
    %c0_i32 = arith.constant 0 : i32
    %c0_i32_0 = arith.constant 0 : i32
    %c0_i32_1 = arith.constant 0 : i32
    return %c0_i32, %c0_i32_0 : i32, i32
  }
  func.func @transform_3(%arg0: i32) -> (i32, i32, i32) {
    %c0_i32 = arith.constant 0 : i32
    %c0_i32_0 = arith.constant 0 : i32
    %c0_i32_1 = arith.constant 0 : i32
    return %arg0, %c0_i32, %c0_i32_0 : i32, i32, i32
  }
}

</mosaic_0001>

<llo_original>
// kernel: outconv2d_forward.1
$region0: #{outconv2d_forward.1}
  #allocation0 [shape = 'u32[]', space=smem, size = 0x4, offset = 0x4, fixed_abs, tag = 'smem constant byte address 0x4 - core index']
  #allocation1 [shape = 'u32[144,128]{1,0:T(1,128)}', space=vmem, size = 0x12000, scoped, tag = 'internal scratch']
  #allocation2 [shape = 'f32[1,1]{1,0:T(1,128)S(6)}', space=smem, size = 0x200, scoped, tag = 'scoped memory for outconv2d_forward.1']
  %s0 = inlined_call_operand.vmem [shape: bf16[2,64,768], index: 0, kind: input, shape index: {}]
  %s1 = inlined_call_operand.vmem [shape: bf16[64,64], index: 1, kind: input, shape index: {}]
  %s2 = inlined_call_operand.<no memory space> [shape: f32[1,1], index: 2, kind: input, shape index: {}]
  %s3 = inlined_call_operand.vmem [shape: f32[2,1,768], index: 3, kind: output, shape index: {}]
  %s4 = sld [smem:[#allocation0]]
  $region45: #{outconv2d_forward.1} parent=0
    _
  %s6 = ssub.s32 1, %s4
  %s7 = scalar_select 0, %s6, %s4
  %8 = sst [smem:[#allocation2]] %s2
  loop: start=0, step=1, limit=4
  $region2: #{outconv2d_forward.1} parent=0 // loop_pre_header
    _
  $region3: #{outconv2d_forward.1} parent=0 // loop_header
    %s10 = sphi 0, %s14
    %p11 = scmp.ge.s32.totalorder %s10, 4
    %s20 = sphi 0, %s22
    %s23 = sphi 0, %s20
    %s24 = sphi 0, %s23
    %s40 = sphi 0, %s24
    %s44 = sphi 0, %s44
    %s46 = sphi 0, %s44
    %s47 = sphi 0, %s46
    %s61 = sphi 0, %s47
    %s65 = sphi 0, %s65
    %s67 = sphi 0, %s65
    %s68 = sphi 0, %s67
    %s82 = sphi 0, %s68
    %s88 = sphi 0, %s90
    %s91 = sphi 0, %s88
    %s92 = sphi 0, %s91
    %s108 = sphi 0, %s92
  $region4: #{outconv2d_forward.1} parent=0 // loop_header_branch
    %13 = sbr.rel (%p11) target = $region8
  $region5: #{outconv2d_forward.1} parent=0 // loop_body
    %s15 = ssub.s32 %s10, 1
    %s16 = ssub.s32 %s10, 2
    %s17 = sadd.s32 %s10, 1
    %s18 = ssub.s32 %s10, %s17
    %p19 = scmp.eq.s32.totalorder %s18, 0
    %s21 = sadd.s32 %s20, 1
    %s22 = scalar_select %p19, %s20, %s21
    %p25 = pneg %p19
    %p26 = scmp.eq.s32.totalorder %s10, 1
    %p27 = por %p25, %p26
    %p28 = scmp.ne.s32.totalorder %s20, %s23
    %p29 = scmp.eq.s32.totalorder %s10, 0
    %p30 = por %p28, %p29
    %p31 = scmp.ne.s32.totalorder %s20, %s23
    %p32 = scmp.eq.s32.totalorder %s15, 1
    %p33 = por %p31, %p32
    %p34 = scmp.ne.s32.totalorder %s23, %s24
    %p35 = scmp.eq.s32.totalorder %s15, 0
    %p36 = por %p34, %p35
    %p37 = scmp.ne.s32.totalorder %s23, %s24
    %p38 = scmp.eq.s32.totalorder %s16, 1
    %p39 = por %p37, %p38
    %p41 = scmp.ne.s32.totalorder %s24, %s40
    %p42 = scmp.eq.s32.totalorder %s16, 0
    %p43 = por %p41, %p42
    %s45 = sadd.s32 %s44, 1
    %p48 = scmp.eq.s32.totalorder %s10, 1
    %p49 = scmp.ne.s32.totalorder %s44, %s46
    %p50 = scmp.eq.s32.totalorder %s10, 0
    %p51 = por %p49, %p50
    %p52 = scmp.ne.s32.totalorder %s44, %s46
    %p53 = scmp.eq.s32.totalorder %s15, 1
    %p54 = por %p52, %p53
    %p55 = scmp.ne.s32.totalorder %s46, %s47
    %p56 = scmp.eq.s32.totalorder %s15, 0
    %p57 = por %p55, %p56
    %p58 = scmp.ne.s32.totalorder %s46, %s47
    %p59 = scmp.eq.s32.totalorder %s16, 1
    %p60 = por %p58, %p59
    %p62 = scmp.ne.s32.totalorder %s47, %s61
    %p63 = scmp.eq.s32.totalorder %s16, 0
    %p64 = por %p62, %p63
    %s66 = sadd.s32 %s65, 1
    %p69 = scmp.eq.s32.totalorder %s10, 1
    %p70 = scmp.ne.s32.totalorder %s65, %s67
    %p71 = scmp.eq.s32.totalorder %s10, 0
    %p72 = por %p70, %p71
    %p73 = scmp.ne.s32.totalorder %s65, %s67
    %p74 = scmp.eq.s32.totalorder %s15, 1
    %p75 = por %p73, %p74
    %p76 = scmp.ne.s32.totalorder %s67, %s68
    %p77 = scmp.eq.s32.totalorder %s15, 0
    %p78 = por %p76, %p77
    %p79 = scmp.ne.s32.totalorder %s67, %s68
    %p80 = scmp.eq.s32.totalorder %s16, 1
    %p81 = por %p79, %p80
    %p83 = scmp.ne.s32.totalorder %s68, %s82
    %p84 = scmp.eq.s32.totalorder %s16, 0
    %p85 = por %p83, %p84
    %s86 = ssub.s32 %s10, %s17
    %p87 = scmp.eq.s32.totalorder %s86, 0
    %s89 = sadd.s32 %s88, 1
    %s90 = scalar_select %p87, %s88, %s89
    %p93 = pneg %p87
    %p94 = scmp.eq.s32.totalorder %s10, 1
    %p95 = por %p93, %p94
    %p96 = scmp.ne.s32.totalorder %s88, %s91
    %p97 = scmp.eq.s32.totalorder %s10, 0
    %p98 = por %p96, %p97
    %p99 = scmp.ne.s32.totalorder %s88, %s91
    %p100 = scmp.eq.s32.totalorder %s15, 1
    %p101 = por %p99, %p100
    %p102 = scmp.ne.s32.totalorder %s91, %s92
    %p103 = scmp.eq.s32.totalorder %s15, 0
    %p104 = por %p102, %p103
    %p105 = scmp.ne.s32.totalorder %s91, %s92
    %p106 = scmp.eq.s32.totalorder %s16, 1
    %p107 = por %p105, %p106
    %p109 = scmp.ne.s32.totalorder %s92, %s108
    %p110 = scmp.eq.s32.totalorder %s16, 0
    %p111 = por %p109, %p110
    %p112 = scmp.le.s32.totalorder 1, %s10
    %p113 = scmp.lt.s32.totalorder %s10, 3
    %p114 = pnand %p112, %p113
    %p115 = pneg %p114
    // Predicated region
    $region9: #{outconv2d_forward.1} parent=5 // pred_check
      _
    $region10: #{outconv2d_forward.1} parent=5 // pred_check_branch
      %117 = sbr.rel (%p114) target = $region12
    $region11: #{outconv2d_forward.1} parent=5 // pred_region
      %s118 = ssub.s32 %s10, 1
      // Predicated region
      $region13: #{outconv2d_forward.1} parent=11 // pred_check
        %p119 = pneg %p57
      $region14: #{outconv2d_forward.1} parent=11 // pred_check_branch
        %121 = sbr.rel (%p119) target = $region16
      $region15: #{outconv2d_forward.1} parent=11 // pred_region
        _
      $region16: #{outconv2d_forward.1} parent=11 // pred_fallthru
        _
      // Predicated region
      $region17: #{outconv2d_forward.1} parent=11 // pred_check
        %p122 = pneg %p78
      $region18: #{outconv2d_forward.1} parent=11 // pred_check_branch
        %124 = sbr.rel (%p122) target = $region20
      $region19: #{outconv2d_forward.1} parent=11 // pred_region
        _
      $region20: #{outconv2d_forward.1} parent=11 // pred_fallthru
        _
    $region12: #{outconv2d_forward.1} parent=5 // pred_fallthru
      _
    %p125 = scmp.lt.s32.totalorder %s10, 2
    // Predicated region
    $region21: #{outconv2d_forward.1} parent=5 // pred_check
      %p126 = pneg %p125
    $region22: #{outconv2d_forward.1} parent=5 // pred_check_branch
      %128 = sbr.rel (%p126) target = $region24
    $region23: #{outconv2d_forward.1} parent=5 // pred_region
      // Predicated region
      $region25: #{outconv2d_forward.1} parent=23 // pred_check
        %p129 = pneg %p30
      $region26: #{outconv2d_forward.1} parent=23 // pred_check_branch
        %131 = sbr.rel (%p129) target = $region28
      $region27: #{outconv2d_forward.1} parent=23 // pred_region
        %p132 = scmp.lt.s32.totalorder %s10, 1
        %s133 = scalar_select %p132, %s10, 1
        %s134 = smul.addr %s133, 48
        %s135 = smul.addr %s134, 4
        %s136 = scalar_lea.vmem %s0, %s135
      $region28: #{outconv2d_forward.1} parent=23 // pred_fallthru
        _
    $region24: #{outconv2d_forward.1} parent=5 // pred_fallthru
      _
    %p137 = scmp.le.s32.totalorder 1, %s10
    %p138 = scmp.lt.s32.totalorder %s10, 3
    %p139 = pnand %p137, %p138
    %p140 = pneg %p139
    // Predicated region
    $region29: #{outconv2d_forward.1} parent=5 // pred_check
      _
    $region30: #{outconv2d_forward.1} parent=5 // pred_check_branch
      %142 = sbr.rel (%p139) target = $region32
    $region31: #{outconv2d_forward.1} parent=5 // pred_region
      %s143 = ssub.s32 %s10, 1
      %p144 = scmp.lt.s32.totalorder %s15, 1
      %s145 = scalar_select %p144, %s15, 1
      %s146 = smul.addr %s145, 48
      %s147 = smul.addr %s146, 4
      %s148 = scalar_lea.vmem %s0, %s147
      %p149 = pneg %p36
      %p150 = pneg %p33
      %p151 = pneg %p57
      %p152 = pneg %p54
      %p153 = pneg %p78
      %p154 = pneg %p75
      %p155 = pneg %p104
      %p156 = pneg %p101
      %p157 = scmp.lt.s32.totalorder %s15, 1
      %s158 = scalar_select %p157, %s15, 1
      %s159 = smul.addr %s158, 6
      %s160 = scalar_lea.vmem %s3, %s159
      %p161 = scmp.lt.s32.totalorder %s15, 1
      %s162 = scalar_select %p161, %s15, 1
      %s163 = smul.addr %s162, 48
      %s164 = smul.addr %s163, 4
      %s165 = scalar_lea.vmem %s0, %s164
      %p166 = scmp.lt.s32.totalorder %s15, 1
      %s167 = scalar_select %p166, %s15, 1
      %s168 = smul.addr %s167, 6
      %s169 = scalar_lea.vmem %s3, %s168
      %v171 = vld [vmem:[%s165] sm:$0xff]
      %v172 = vld [vmem:[%s165 + $0x8] sm:$0xff]
      %v173 = vld [vmem:[%s165 + $0x10] sm:$0xff]
      %v174 = vld [vmem:[%s165 + $0x18] sm:$0xff]
      %v175 = vld [vmem:[%s165 + $0x20] sm:$0xff]
      %v176 = vld [vmem:[%s165 + $0x28] sm:$0xff]
      %v177 = vld [vmem:[%s165 + $0x30] sm:$0xff]
      %v178 = vld [vmem:[%s165 + $0x38] sm:$0xff]
      %v179 = vld [vmem:[%s165 + $0x40] sm:$0xff]
      %v180 = vld [vmem:[%s165 + $0x48] sm:$0xff]
      %v181 = vld [vmem:[%s165 + $0x50] sm:$0xff]
      %v182 = vld [vmem:[%s165 + $0x58] sm:$0xff]
      %v183 = vld [vmem:[%s165 + $0x60] sm:$0xff]
      %v184 = vld [vmem:[%s165 + $0x68] sm:$0xff]
      %v185 = vld [vmem:[%s165 + $0x70] sm:$0xff]
      %v186 = vld [vmem:[%s165 + $0x78] sm:$0xff]
      %v187 = vld [vmem:[%s165 + $0x80] sm:$0xff]
      %v188 = vld [vmem:[%s165 + $0x88] sm:$0xff]
      %v189 = vld [vmem:[%s165 + $0x90] sm:$0xff]
      %v190 = vld [vmem:[%s165 + $0x98] sm:$0xff]
      %v191 = vld [vmem:[%s165 + $0xa0] sm:$0xff]
      %v192 = vld [vmem:[%s165 + $0xa8] sm:$0xff]
      %v193 = vld [vmem:[%s165 + $0xb0] sm:$0xff]
      %v194 = vld [vmem:[%s165 + $0xb8] sm:$0xff]
      %v195 = vld [vmem:[%s1] sm:$0xf]
      %v196 = vld [vmem:[%s1 + $0x4] sm:$0xf]
      %v197 = vld [vmem:[%s1 + $0x8] sm:$0xf]
      %v198 = vld [vmem:[%s1 + $0xc] sm:$0xf]
      %v199 = vld [vmem:[%s1 + $0x10] sm:$0xf]
      %v200 = vld [vmem:[%s1 + $0x14] sm:$0xf]
      %v201 = vld [vmem:[%s1 + $0x18] sm:$0xf]
      %v202 = vld [vmem:[%s1 + $0x1c] sm:$0xf]
      %v211 = vunpack.c.l.b16 %v195
      %v212 = vunpack.c.l.b16 %v196
      %v213 = vunpack.c.l.b16 %v197
      %v214 = vunpack.c.l.b16 %v198
      %v215 = vunpack.c.l.b16 %v199
      %v216 = vunpack.c.l.b16 %v200
      %v217 = vunpack.c.l.b16 %v201
      %v218 = vunpack.c.l.b16 %v202
      %v219 = vpack.c.b16 %v212, %v211
      %v220 = vpack.c.b16 %v214, %v213
      %v221 = vpack.c.b16 %v216, %v215
      %v222 = vpack.c.b16 %v218, %v217
      %v247 = vunpack.c.l.b16 %v171
      %v248 = vunpack.c.h.b16 %v171
      %v249 = vunpack.c.l.b16 %v172
      %v250 = vunpack.c.h.b16 %v172
      %v251 = vunpack.c.l.b16 %v173
      %v252 = vunpack.c.h.b16 %v173
      %v253 = vunpack.c.l.b16 %v174
      %v254 = vunpack.c.h.b16 %v174
      %v255 = vunpack.c.l.b16 %v175
      %v256 = vunpack.c.h.b16 %v175
      %v257 = vunpack.c.l.b16 %v176
      %v258 = vunpack.c.h.b16 %v176
      %v259 = vunpack.c.l.b16 %v177
      %v260 = vunpack.c.h.b16 %v177
      %v261 = vunpack.c.l.b16 %v178
      %v262 = vunpack.c.h.b16 %v178
      %v263 = vunpack.c.l.b16 %v179
      %v264 = vunpack.c.h.b16 %v179
      %v265 = vunpack.c.l.b16 %v180
      %v266 = vunpack.c.h.b16 %v180
      %v267 = vunpack.c.l.b16 %v181
      %v268 = vunpack.c.h.b16 %v181
      %v269 = vunpack.c.l.b16 %v182
      %v270 = vunpack.c.h.b16 %v182
      %v271 = vunpack.c.l.b16 %v183
      %v272 = vunpack.c.h.b16 %v183
      %v273 = vunpack.c.l.b16 %v184
      %v274 = vunpack.c.h.b16 %v184
      %v275 = vunpack.c.l.b16 %v185
      %v276 = vunpack.c.h.b16 %v185
      %v277 = vunpack.c.l.b16 %v186
      %v278 = vunpack.c.h.b16 %v186
      %v279 = vunpack.c.l.b16 %v187
      %v280 = vunpack.c.h.b16 %v187
      %v281 = vunpack.c.l.b16 %v188
      %v282 = vunpack.c.h.b16 %v188
      %v283 = vunpack.c.l.b16 %v189
      %v284 = vunpack.c.h.b16 %v189
      %v285 = vunpack.c.l.b16 %v190
      %v286 = vunpack.c.h.b16 %v190
      %v287 = vunpack.c.l.b16 %v191
      %v288 = vunpack.c.h.b16 %v191
      %v289 = vunpack.c.l.b16 %v192
      %v290 = vunpack.c.h.b16 %v192
      %v291 = vunpack.c.l.b16 %v193
      %v292 = vunpack.c.h.b16 %v193
      %v293 = vunpack.c.l.b16 %v194
      %v294 = vunpack.c.h.b16 %v194
      %v295 = vpack.c.b16 %v253, %v247
      %v296 = vpack.c.b16 %v254, %v248
      %v297 = vpack.c.b16 %v255, %v249
      %v298 = vpack.c.b16 %v256, %v250
      %v299 = vpack.c.b16 %v257, %v251
      %v300 = vpack.c.b16 %v258, %v252
      %v301 = vpack.c.b16 %v265, %v259
      %v302 = vpack.c.b16 %v266, %v260
      %v303 = vpack.c.b16 %v267, %v261
      %v304 = vpack.c.b16 %v268, %v262
      %v305 = vpack.c.b16 %v269, %v263
      %v306 = vpack.c.b16 %v270, %v264
      %v307 = vpack.c.b16 %v277, %v271
      %v308 = vpack.c.b16 %v278, %v272
      %v309 = vpack.c.b16 %v279, %v273
      %v310 = vpack.c.b16 %v280, %v274
      %v311 = vpack.c.b16 %v281, %v275
      %v312 = vpack.c.b16 %v282, %v276
      %v313 = vpack.c.b16 %v289, %v283
      %v314 = vpack.c.b16 %v290, %v284
      %v315 = vpack.c.b16 %v291, %v285
      %v316 = vpack.c.b16 %v292, %v286
      %v317 = vpack.c.b16 %v293, %v287
      %v318 = vpack.c.b16 %v294, %v288
      %vm343 = vcmask 523264
      %v345 = vsel %vm343, %v219, 0
      %v348 = vsel %vm343, %v220, 0
      %v351 = vsel %vm343, %v221, 0
      %v354 = vsel %vm343, %v222, 0
      %356 = vmatprep.subr.bf16.mxu0 %v296
      %357 = vmatpush1.bf16.msra.mxu0 %v295
      %358 = vmatprep.subr.bf16.mxu0 %v302
      %359 = vmatpush1.bf16.msra.mxu0 %v301
      %360 = vmatprep.subr.bf16.mxu0 %v308
      %361 = vmatpush1.bf16.msra.mxu0 %v307
      %362 = vmatprep.subr.bf16.mxu0 %v314
      %363 = vmatpush1.bf16.msra.mxu0 %v313
      %364 = vmatprep.subr.bf16.mxu0 0
      %365 = vmatpush1.bf16.msra.mxu0 0
      %366 = vmatprep.subr.bf16.mxu0 0
      %367 = vmatpush1.bf16.msra.mxu0 0
      %368 = vmatprep.subr.bf16.mxu0 0
      %369 = vmatpush1.bf16.msra.mxu0 0
      %370 = vmatprep.subr.bf16.mxu0 0
      %371 = vmatpush1.bf16.msra.mxu0 0
      %372 = vmatprep.subr.bf16.mxu0 0
      %373 = vmatpush1.bf16.msra.mxu0 0
      %374 = vmatprep.subr.bf16.mxu0 0
      %375 = vmatpush1.bf16.msra.mxu0 0
      %376 = vmatprep.subr.bf16.mxu0 0
      %377 = vmatpush1.bf16.msra.mxu0 0
      %378 = vmatprep.subr.bf16.mxu0 0
      %379 = vmatpush1.bf16.msra.mxu0 0
      %380 = vmatprep.subr.bf16.mxu0 0
      %381 = vmatpush1.bf16.msra.mxu0 0
      %382 = vmatprep.subr.bf16.mxu0 0
      %383 = vmatpush1.bf16.msra.mxu0 0
      %384 = vmatprep.subr.bf16.mxu0 0
      %385 = vmatpush1.bf16.msra.mxu0 0
      %386 = vmatprep.subr.bf16.mxu0 0
      %387 = vmatpush1.bf16.msra.mxu0 0
      %388 = vmatprep.mubr.bf16.mxu0 0
      %389 = vmatmul.mubr.bf16.gmra.mrb[0].mxu0 %v345
      %v390 = vpop.f32.mrb[0].mxu0
      %v391 = vadd.f32 0.0, %v390
      %v392 = vpop.f32.mrb[0].mxu0
      %v393 = vadd.f32 0.0, %v392
      %v394 = vpop.f32.mrb[0].mxu0
      %v395 = vadd.f32 0.0, %v394
      %v396 = vpop.f32.mrb[0].mxu0
      %v397 = vadd.f32 0.0, %v396
      %398 = vmatprep.mubr.bf16.mxu0 0
      %399 = vmatmul.mubr.bf16.gmra.mrb[0].mxu0 %v348
      %v400 = vpop.f32.mrb[0].mxu0
      %v401 = vadd.f32 0.0, %v400
      %v402 = vpop.f32.mrb[0].mxu0
      %v403 = vadd.f32 0.0, %v402
      %v404 = vpop.f32.mrb[0].mxu0
      %v405 = vadd.f32 0.0, %v404
      %v406 = vpop.f32.mrb[0].mxu0
      %v407 = vadd.f32 0.0, %v406
      %408 = vmatprep.mubr.bf16.mxu0 0
      %409 = vmatmul.mubr.bf16.gmra.mrb[0].mxu0 %v351
      %v410 = vpop.f32.mrb[0].mxu0
      %v411 = vadd.f32 0.0, %v410
      %v412 = vpop.f32.mrb[0].mxu0
      %v413 = vadd.f32 0.0, %v412
      %v414 = vpop.f32.mrb[0].mxu0
      %v415 = vadd.f32 0.0, %v414
      %v416 = vpop.f32.mrb[0].mxu0
      %v417 = vadd.f32 0.0, %v416
      %418 = vmatprep.mubr.bf16.mxu0 0
      %419 = vmatmul.mubr.bf16.gmra.mrb[0].mxu0 %v354
      %v420 = vpop.f32.mrb[0].mxu0
      %v421 = vadd.f32 0.0, %v420
      %v422 = vpop.f32.mrb[0].mxu0
      %v423 = vadd.f32 0.0, %v422
      %v424 = vpop.f32.mrb[0].mxu0
      %v425 = vadd.f32 0.0, %v424
      %v426 = vpop.f32.mrb[0].mxu0
      %v427 = vadd.f32 0.0, %v426
      %428 = vdwg.mxu0
      %429 = vmatprep.subr.bf16.mxu0 %v298
      %430 = vmatpush1.bf16.msra.mxu0 %v297
      %431 = vmatprep.subr.bf16.mxu0 %v304
      %432 = vmatpush1.bf16.msra.mxu0 %v303
      %433 = vmatprep.subr.bf16.mxu0 %v310
      %434 = vmatpush1.bf16.msra.mxu0 %v309
      %435 = vmatprep.subr.bf16.mxu0 %v316
      %436 = vmatpush1.bf16.msra.mxu0 %v315
      %437 = vmatprep.subr.bf16.mxu0 0
      %438 = vmatpush1.bf16.msra.mxu0 0
      %439 = vmatprep.subr.bf16.mxu0 0
      %440 = vmatpush1.bf16.msra.mxu0 0
      %441 = vmatprep.subr.bf16.mxu0 0
      %442 = vmatpush1.bf16.msra.mxu0 0
      %443 = vmatprep.subr.bf16.mxu0 0
      %444 = vmatpush1.bf16.msra.mxu0 0
      %445 = vmatprep.subr.bf16.mxu0 0
      %446 = vmatpush1.bf16.msra.mxu0 0
      %447 = vmatprep.subr.bf16.mxu0 0
      %448 = vmatpush1.bf16.msra.mxu0 0
      %449 = vmatprep.subr.bf16.mxu0 0
      %450 = vmatpush1.bf16.msra.mxu0 0
      %451 = vmatprep.subr.bf16.mxu0 0
      %452 = vmatpush1.bf16.msra.mxu0 0
      %453 = vmatprep.subr.bf16.mxu0 0
      %454 = vmatpush1.bf16.msra.mxu0 0
      %455 = vmatprep.subr.bf16.mxu0 0
      %456 = vmatpush1.bf16.msra.mxu0 0
      %457 = vmatprep.subr.bf16.mxu0 0
      %458 = vmatpush1.bf16.msra.mxu0 0
      %459 = vmatprep.subr.bf16.mxu0 0
      %460 = vmatpush1.bf16.msra.mxu0 0
      %461 = vmatprep.mubr.bf16.mxu0 0
      %462 = vmatmul.mubr.bf16.gmra.mrb[0].mxu0 %v345
      %v463 = vpop.f32.mrb[0].mxu0
      %v464 = vadd.f32 0.0, %v463
      %v465 = vpop.f32.mrb[0].mxu0
      %v466 = vadd.f32 0.0, %v465
      %v467 = vpop.f32.mrb[0].mxu0
      %v468 = vadd.f32 0.0, %v467
      %v469 = vpop.f32.mrb[0].mxu0
      %v470 = vadd.f32 0.0, %v469
      %471 = vmatprep.mubr.bf16.mxu0 0
      %472 = vmatmul.mubr.bf16.gmra.mrb[0].mxu0 %v348
      %v473 = vpop.f32.mrb[0].mxu0
      %v474 = vadd.f32 0.0, %v473
      %v475 = vpop.f32.mrb[0].mxu0
      %v476 = vadd.f32 0.0, %v475
      %v477 = vpop.f32.mrb[0].mxu0
      %v478 = vadd.f32 0.0, %v477
      %v479 = vpop.f32.mrb[0].mxu0
      %v480 = vadd.f32 0.0, %v479
      %481 = vmatprep.mubr.bf16.mxu0 0
      %482 = vmatmul.mubr.bf16.gmra.mrb[0].mxu0 %v351
      %v483 = vpop.f32.mrb[0].mxu0
      %v484 = vadd.f32 0.0, %v483
      %v485 = vpop.f32.mrb[0].mxu0
      %v486 = vadd.f32 0.0, %v485
      %v487 = vpop.f32.mrb[0].mxu0
      %v488 = vadd.f32 0.0, %v487
      %v489 = vpop.f32.mrb[0].mxu0
      %v490 = vadd.f32 0.0, %v489
      %491 = vmatprep.mubr.bf16.mxu0 0
      %492 = vmatmul.mubr.bf16.gmra.mrb[0].mxu0 %v354
      %v493 = vpop.f32.mrb[0].mxu0
      %v494 = vadd.f32 0.0, %v493
      %v495 = vpop.f32.mrb[0].mxu0
      %v496 = vadd.f32 0.0, %v495
      %v497 = vpop.f32.mrb[0].mxu0
      %v498 = vadd.f32 0.0, %v497
      %v499 = vpop.f32.mrb[0].mxu0
      %v500 = vadd.f32 0.0, %v499
      %501 = vdwg.mxu0
      %502 = vmatprep.subr.bf16.mxu0 %v300
      %503 = vmatpush1.bf16.msra.mxu0 %v299
      %504 = vmatprep.subr.bf16.mxu0 %v306
      %505 = vmatpush1.bf16.msra.mxu0 %v305
      %506 = vmatprep.subr.bf16.mxu0 %v312
      %507 = vmatpush1.bf16.msra.mxu0 %v311
      %508 = vmatprep.subr.bf16.mxu0 %v318
      %509 = vmatpush1.bf16.msra.mxu0 %v317
      %510 = vmatprep.subr.bf16.mxu0 0
      %511 = vmatpush1.bf16.msra.mxu0 0
      %512 = vmatprep.subr.bf16.mxu0 0
      %513 = vmatpush1.bf16.msra.mxu0 0
      %514 = vmatprep.subr.bf16.mxu0 0
      %515 = vmatpush1.bf16.msra.mxu0 0
      %516 = vmatprep.subr.bf16.mxu0 0
      %517 = vmatpush1.bf16.msra.mxu0 0
      %518 = vmatprep.subr.bf16.mxu0 0
      %519 = vmatpush1.bf16.msra.mxu0 0
      %520 = vmatprep.subr.bf16.mxu0 0
      %521 = vmatpush1.bf16.msra.mxu0 0
      %522 = vmatprep.subr.bf16.mxu0 0
      %523 = vmatpush1.bf16.msra.mxu0 0
      %524 = vmatprep.subr.bf16.mxu0 0
      %525 = vmatpush1.bf16.msra.mxu0 0
      %526 = vmatprep.subr.bf16.mxu0 0
      %527 = vmatpush1.bf16.msra.mxu0 0
      %528 = vmatprep.subr.bf16.mxu0 0
      %529 = vmatpush1.bf16.msra.mxu0 0
      %530 = vmatprep.subr.bf16.mxu0 0
      %531 = vmatpush1.bf16.msra.mxu0 0
      %532 = vmatprep.subr.bf16.mxu0 0
      %533 = vmatpush1.bf16.msra.mxu0 0
      %534 = vmatprep.mubr.bf16.mxu0 0
      %535 = vmatmul.mubr.bf16.gmra.mrb[0].mxu0 %v345
      %v536 = vpop.f32.mrb[0].mxu0
      %v537 = vadd.f32 0.0, %v536
      %v538 = vpop.f32.mrb[0].mxu0
      %v539 = vadd.f32 0.0, %v538
      %v540 = vpop.f32.mrb[0].mxu0
      %v541 = vadd.f32 0.0, %v540
      %v542 = vpop.f32.mrb[0].mxu0
      %v543 = vadd.f32 0.0, %v542
      %544 = vmatprep.mubr.bf16.mxu0 0
      %545 = vmatmul.mubr.bf16.gmra.mrb[0].mxu0 %v348
      %v546 = vpop.f32.mrb[0].mxu0
      %v547 = vadd.f32 0.0, %v546
      %v548 = vpop.f32.mrb[0].mxu0
      %v549 = vadd.f32 0.0, %v548
      %v550 = vpop.f32.mrb[0].mxu0
      %v551 = vadd.f32 0.0, %v550
      %v552 = vpop.f32.mrb[0].mxu0
      %v553 = vadd.f32 0.0, %v552
      %554 = vmatprep.mubr.bf16.mxu0 0
      %555 = vmatmul.mubr.bf16.gmra.mrb[0].mxu0 %v351
      %v556 = vpop.f32.mrb[0].mxu0
      %v557 = vadd.f32 0.0, %v556
      %v558 = vpop.f32.mrb[0].mxu0
      %v559 = vadd.f32 0.0, %v558
      %v560 = vpop.f32.mrb[0].mxu0
      %v561 = vadd.f32 0.0, %v560
      %v562 = vpop.f32.mrb[0].mxu0
      %v563 = vadd.f32 0.0, %v562
      %564 = vmatprep.mubr.bf16.mxu0 0
      %565 = vmatmul.mubr.bf16.gmra.mrb[0].mxu0 %v354
      %v566 = vpop.f32.mrb[0].mxu0
      %v567 = vadd.f32 0.0, %v566
      %v568 = vpop.f32.mrb[0].mxu0
      %v569 = vadd.f32 0.0, %v568
      %v570 = vpop.f32.mrb[0].mxu0
      %v571 = vadd.f32 0.0, %v570
      %v572 = vpop.f32.mrb[0].mxu0
      %v573 = vadd.f32 0.0, %v572
      %574 = vdwg.mxu0
      %s576 = sor.u32 256, 46
      %577 = vrot.lane.b32.xlu0 %v391, %s576
      %v578 = vpop.permute.xlu0 %577
      %s580 = sor.u32 256, 46
      %581 = vrot.lane.b32.xlu0 %v393, %s580
      %v582 = vpop.permute.xlu0 %581
      %s584 = sor.u32 256, 46
      %585 = vrot.lane.b32.xlu0 %v464, %s584
      %v586 = vpop.permute.xlu0 %585
      %s588 = sor.u32 256, 46
      %589 = vrot.lane.b32.xlu0 %v466, %s588
      %v590 = vpop.permute.xlu0 %589
      %s592 = sor.u32 256, 46
      %593 = vrot.lane.b32.xlu0 %v537, %s592
      %v594 = vpop.permute.xlu0 %593
      %s596 = sor.u32 256, 46
      %597 = vrot.lane.b32.xlu0 %v539, %s596
      %v598 = vpop.permute.xlu0 %597
      %v599 = vlaneseq
      %v600 = vshrl.u32 %v599, 7
      %v601 = vadd.s32 %v600, 46
      %v602 = vlaneseq
      %v603 = vand.u32 %v602, 127
      %vm604 = vcmp.lt.s32.totalorder %v603, %v601
      %v605 = vsel %vm604, %v594, %v598
      %v606 = vsel %vm604, %v590, %v594
      %v607 = vsel %vm604, %v586, %v590
      %v608 = vsel %vm604, %v582, %v586
      %v609 = vsel %vm604, %v578, %v582
      %v610 = vsel %vm604, %v598, %v578
      %s612 = sor.u32 256, 54
      %613 = vrot.lane.b32.xlu0 %v395, %s612
      %v614 = vpop.permute.xlu0 %613
      %s616 = sor.u32 256, 54
      %617 = vrot.lane.b32.xlu0 %v397, %s616
      %v618 = vpop.permute.xlu0 %617
      %s620 = sor.u32 256, 54
      %621 = vrot.lane.b32.xlu0 %v468, %s620
      %v622 = vpop.permute.xlu0 %621
      %s624 = sor.u32 256, 54
      %625 = vrot.lane.b32.xlu0 %v470, %s624
      %v626 = vpop.permute.xlu0 %625
      %s628 = sor.u32 256, 54
      %629 = vrot.lane.b32.xlu0 %v541, %s628
      %v630 = vpop.permute.xlu0 %629
      %s632 = sor.u32 256, 54
      %633 = vrot.lane.b32.xlu0 %v543, %s632
      %v634 = vpop.permute.xlu0 %633
      %v635 = vadd.s32 %v600, 54
      %vm636 = vcmp.lt.s32.totalorder %v603, %v635
      %v637 = vsel %vm636, %v630, %v634
      %v638 = vsel %vm636, %v626, %v630
      %v639 = vsel %vm636, %v622, %v626
      %v640 = vsel %vm636, %v618, %v622
      %v641 = vsel %vm636, %v614, %v618
      %v642 = vsel %vm636, %v634, %v614
      %s644 = sor.u32 256, 62
      %645 = vrot.lane.b32.xlu0 %v401, %s644
      %v646 = vpop.permute.xlu0 %645
      %s648 = sor.u32 256, 62
      %649 = vrot.lane.b32.xlu0 %v403, %s648
      %v650 = vpop.permute.xlu0 %649
      %s652 = sor.u32 256, 62
      %653 = vrot.lane.b32.xlu0 %v474, %s652
      %v654 = vpop.permute.xlu0 %653
      %s656 = sor.u32 256, 62
      %657 = vrot.lane.b32.xlu0 %v476, %s656
      %v658 = vpop.permute.xlu0 %657
      %s660 = sor.u32 256, 62
      %661 = vrot.lane.b32.xlu0 %v547, %s660
      %v662 = vpop.permute.xlu0 %661
      %s664 = sor.u32 256, 62
      %665 = vrot.lane.b32.xlu0 %v549, %s664
      %v666 = vpop.permute.xlu0 %665
      %v667 = vadd.s32 %v600, 62
      %vm668 = vcmp.lt.s32.totalorder %v603, %v667
      %v669 = vsel %vm668, %v662, %v666
      %v670 = vsel %vm668, %v658, %v662
      %v671 = vsel %vm668, %v654, %v658
      %v672 = vsel %vm668, %v650, %v654
      %v673 = vsel %vm668, %v646, %v650
      %v674 = vsel %vm668, %v666, %v646
      %s676 = sor.u32 256, 70
      %677 = vrot.lane.b32.xlu0 %v405, %s676
      %v678 = vpop.permute.xlu0 %677
      %s680 = sor.u32 256, 70
      %681 = vrot.lane.b32.xlu0 %v407, %s680
      %v682 = vpop.permute.xlu0 %681
      %s684 = sor.u32 256, 70
      %685 = vrot.lane.b32.xlu0 %v478, %s684
      %v686 = vpop.permute.xlu0 %685
      %s688 = sor.u32 256, 70
      %689 = vrot.lane.b32.xlu0 %v480, %s688
      %v690 = vpop.permute.xlu0 %689
      %s692 = sor.u32 256, 70
      %693 = vrot.lane.b32.xlu0 %v551, %s692
      %v694 = vpop.permute.xlu0 %693
      %s696 = sor.u32 256, 70
      %697 = vrot.lane.b32.xlu0 %v553, %s696
      %v698 = vpop.permute.xlu0 %697
      %v699 = vadd.s32 %v600, 70
      %vm700 = vcmp.lt.s32.totalorder %v603, %v699
      %v701 = vsel %vm700, %v694, %v698
      %v702 = vsel %vm700, %v690, %v694
      %v703 = vsel %vm700, %v686, %v690
      %v704 = vsel %vm700, %v682, %v686
      %v705 = vsel %vm700, %v678, %v682
      %v706 = vsel %vm700, %v698, %v678
      %v707 = vadd.f32 %v610, %v642
      %v708 = vadd.f32 %v707, %v674
      %v709 = vadd.f32 %v708, %v706
      %v710 = vrot.slane %v709, 4
      %v711 = vadd.f32 %v709, %v710
      %v712 = vrot.slane %v711, 2
      %v713 = vadd.f32 %v711, %v712
      %v714 = vrot.slane %v713, 1
      %v715 = vadd.f32 %v713, %v714
      %v716 = vadd.f32 %v609, %v641
      %v717 = vadd.f32 %v716, %v673
      %v718 = vadd.f32 %v717, %v705
      %v719 = vrot.slane %v718, 4
      %v720 = vadd.f32 %v718, %v719
      %v721 = vrot.slane %v720, 2
      %v722 = vadd.f32 %v720, %v721
      %v723 = vrot.slane %v722, 1
      %v724 = vadd.f32 %v722, %v723
      %v725 = vadd.f32 %v608, %v640
      %v726 = vadd.f32 %v725, %v672
      %v727 = vadd.f32 %v726, %v704
      %v728 = vrot.slane %v727, 4
      %v729 = vadd.f32 %v727, %v728
      %v730 = vrot.slane %v729, 2
      %v731 = vadd.f32 %v729, %v730
      %v732 = vrot.slane %v731, 1
      %v733 = vadd.f32 %v731, %v732
      %v734 = vadd.f32 %v607, %v639
      %v735 = vadd.f32 %v734, %v671
      %v736 = vadd.f32 %v735, %v703
      %v737 = vrot.slane %v736, 4
      %v738 = vadd.f32 %v736, %v737
      %v739 = vrot.slane %v738, 2
      %v740 = vadd.f32 %v738, %v739
      %v741 = vrot.slane %v740, 1
      %v742 = vadd.f32 %v740, %v741
      %v743 = vadd.f32 %v606, %v638
      %v744 = vadd.f32 %v743, %v670
      %v745 = vadd.f32 %v744, %v702
      %v746 = vrot.slane %v745, 4
      %v747 = vadd.f32 %v745, %v746
      %v748 = vrot.slane %v747, 2
      %v749 = vadd.f32 %v747, %v748
      %v750 = vrot.slane %v749, 1
      %v751 = vadd.f32 %v749, %v750
      %v752 = vadd.f32 %v605, %v637
      %v753 = vadd.f32 %v752, %v669
      %v754 = vadd.f32 %v753, %v701
      %v755 = vrot.slane %v754, 4
      %v756 = vadd.f32 %v754, %v755
      %v757 = vrot.slane %v756, 2
      %v758 = vadd.f32 %v756, %v757
      %v759 = vrot.slane %v758, 1
      %v760 = vadd.f32 %v758, %v759
      %762 = vrot.lane.b32.xlu0 %v411, 256
      %v763 = vpop.permute.xlu0 %762
      %765 = vrot.lane.b32.xlu0 %v413, 256
      %v766 = vpop.permute.xlu0 %765
      %768 = vrot.lane.b32.xlu0 %v484, 256
      %v769 = vpop.permute.xlu0 %768
      %771 = vrot.lane.b32.xlu0 %v486, 256
      %v772 = vpop.permute.xlu0 %771
      %774 = vrot.lane.b32.xlu0 %v557, 256
      %v775 = vpop.permute.xlu0 %774
      %777 = vrot.lane.b32.xlu0 %v559, 256
      %v778 = vpop.permute.xlu0 %777
      %vm779 = vcmp.lt.s32.totalorder %v603, %v600
      %v780 = vsel %vm779, %v775, %v778
      %v781 = vsel %vm779, %v772, %v775
      %v782 = vsel %vm779, %v769, %v772
      %v783 = vsel %vm779, %v766, %v769
      %v784 = vsel %vm779, %v763, %v766
      %v785 = vsel %vm779, %v778, %v763
      %s787 = sor.u32 256, 8
      %788 = vrot.lane.b32.xlu0 %v415, %s787
      %v789 = vpop.permute.xlu0 %788
      %s791 = sor.u32 256, 8
      %792 = vrot.lane.b32.xlu0 %v417, %s791
      %v793 = vpop.permute.xlu0 %792
      %s795 = sor.u32 256, 8
      %796 = vrot.lane.b32.xlu0 %v488, %s795
      %v797 = vpop.permute.xlu0 %796
      %s799 = sor.u32 256, 8
      %800 = vrot.lane.b32.xlu0 %v490, %s799
      %v801 = vpop.permute.xlu0 %800
      %s803 = sor.u32 256, 8
      %804 = vrot.lane.b32.xlu0 %v561, %s803
      %v805 = vpop.permute.xlu0 %804
      %s807 = sor.u32 256, 8
      %808 = vrot.lane.b32.xlu0 %v563, %s807
      %v809 = vpop.permute.xlu0 %808
      %v810 = vadd.s32 %v600, 8
      %vm811 = vcmp.lt.s32.totalorder %v603, %v810
      %v812 = vsel %vm811, %v805, %v809
      %v813 = vsel %vm811, %v801, %v805
      %v814 = vsel %vm811, %v797, %v801
      %v815 = vsel %vm811, %v793, %v797
      %v816 = vsel %vm811, %v789, %v793
      %v817 = vsel %vm811, %v809, %v789
      %s819 = sor.u32 256, 16
      %820 = vrot.lane.b32.xlu0 %v421, %s819
      %v821 = vpop.permute.xlu0 %820
      %s823 = sor.u32 256, 16
      %824 = vrot.lane.b32.xlu0 %v423, %s823
      %v825 = vpop.permute.xlu0 %824
      %s827 = sor.u32 256, 16
      %828 = vrot.lane.b32.xlu0 %v494, %s827
      %v829 = vpop.permute.xlu0 %828
      %s831 = sor.u32 256, 16
      %832 = vrot.lane.b32.xlu0 %v496, %s831
      %v833 = vpop.permute.xlu0 %832
      %s835 = sor.u32 256, 16
      %836 = vrot.lane.b32.xlu0 %v567, %s835
      %v837 = vpop.permute.xlu0 %836
      %s839 = sor.u32 256, 16
      %840 = vrot.lane.b32.xlu0 %v569, %s839
      %v841 = vpop.permute.xlu0 %840
      %v842 = vadd.s32 %v600, 16
      %vm843 = vcmp.lt.s32.totalorder %v603, %v842
      %v844 = vsel %vm843, %v837, %v841
      %v845 = vsel %vm843, %v833, %v837
      %v846 = vsel %vm843, %v829, %v833
      %v847 = vsel %vm843, %v825, %v829
      %v848 = vsel %vm843, %v821, %v825
      %v849 = vsel %vm843, %v841, %v821
      %s851 = sor.u32 256, 24
      %852 = vrot.lane.b32.xlu0 %v425, %s851
      %v853 = vpop.permute.xlu0 %852
      %s855 = sor.u32 256, 24
      %856 = vrot.lane.b32.xlu0 %v427, %s855
      %v857 = vpop.permute.xlu0 %856
      %s859 = sor.u32 256, 24
      %860 = vrot.lane.b32.xlu0 %v498, %s859
      %v861 = vpop.permute.xlu0 %860
      %s863 = sor.u32 256, 24
      %864 = vrot.lane.b32.xlu0 %v500, %s863
      %v865 = vpop.permute.xlu0 %864
      %s867 = sor.u32 256, 24
      %868 = vrot.lane.b32.xlu0 %v571, %s867
      %v869 = vpop.permute.xlu0 %868
      %s871 = sor.u32 256, 24
      %872 = vrot.lane.b32.xlu0 %v573, %s871
      %v873 = vpop.permute.xlu0 %872
      %v874 = vadd.s32 %v600, 24
      %vm875 = vcmp.lt.s32.totalorder %v603, %v874
      %v876 = vsel %vm875, %v869, %v873
      %v877 = vsel %vm875, %v865, %v869
      %v878 = vsel %vm875, %v861, %v865
      %v879 = vsel %vm875, %v857, %v861
      %v880 = vsel %vm875, %v853, %v857
      %v881 = vsel %vm875, %v873, %v853
      %v882 = vadd.f32 %v785, %v817
      %v883 = vadd.f32 %v882, %v849
      %v884 = vadd.f32 %v883, %v881
      %v885 = vrot.slane %v884, 4
      %v886 = vadd.f32 %v884, %v885
      %v887 = vrot.slane %v886, 2
      %v888 = vadd.f32 %v886, %v887
      %v889 = vrot.slane %v888, 1
      %v890 = vadd.f32 %v888, %v889
      %v891 = vadd.f32 %v784, %v816
      %v892 = vadd.f32 %v891, %v848
      %v893 = vadd.f32 %v892, %v880
      %v894 = vrot.slane %v893, 4
      %v895 = vadd.f32 %v893, %v894
      %v896 = vrot.slane %v895, 2
      %v897 = vadd.f32 %v895, %v896
      %v898 = vrot.slane %v897, 1
      %v899 = vadd.f32 %v897, %v898
      %v900 = vadd.f32 %v783, %v815
      %v901 = vadd.f32 %v900, %v847
      %v902 = vadd.f32 %v901, %v879
      %v903 = vrot.slane %v902, 4
      %v904 = vadd.f32 %v902, %v903
      %v905 = vrot.slane %v904, 2
      %v906 = vadd.f32 %v904, %v905
      %v907 = vrot.slane %v906, 1
      %v908 = vadd.f32 %v906, %v907
      %v909 = vadd.f32 %v782, %v814
      %v910 = vadd.f32 %v909, %v846
      %v911 = vadd.f32 %v910, %v878
      %v912 = vrot.slane %v911, 4
      %v913 = vadd.f32 %v911, %v912
      %v914 = vrot.slane %v913, 2
      %v915 = vadd.f32 %v913, %v914
      %v916 = vrot.slane %v915, 1
      %v917 = vadd.f32 %v915, %v916
      %v918 = vadd.f32 %v781, %v813
      %v919 = vadd.f32 %v918, %v845
      %v920 = vadd.f32 %v919, %v877
      %v921 = vrot.slane %v920, 4
      %v922 = vadd.f32 %v920, %v921
      %v923 = vrot.slane %v922, 2
      %v924 = vadd.f32 %v922, %v923
      %v925 = vrot.slane %v924, 1
      %v926 = vadd.f32 %v924, %v925
      %v927 = vadd.f32 %v780, %v812
      %v928 = vadd.f32 %v927, %v844
      %v929 = vadd.f32 %v928, %v876
      %v930 = vrot.slane %v929, 4
      %v931 = vadd.f32 %v929, %v930
      %v932 = vrot.slane %v931, 2
      %v933 = vadd.f32 %v931, %v932
      %v934 = vrot.slane %v933, 1
      %v935 = vadd.f32 %v933, %v934
      %v936 = vadd.f32 %v715, %v890
      %v937 = vadd.f32 %v724, %v899
      %v938 = vadd.f32 %v733, %v908
      %v939 = vadd.f32 %v742, %v917
      %v940 = vadd.f32 %v751, %v926
      %v941 = vadd.f32 %v760, %v935
      %s942 = sld [smem:[#allocation2]]
      %v943 = vstv %s942
      %v944 = vadd.f32 %v936, %v943
      %v945 = vadd.f32 %v937, %v943
      %v946 = vadd.f32 %v938, %v943
      %v947 = vadd.f32 %v939, %v943
      %v948 = vadd.f32 %v940, %v943
      %v949 = vadd.f32 %v941, %v943
      %v950 = vmax.f32 %v944, 0.0
      %v951 = vmax.f32 %v945, 0.0
      %v952 = vmax.f32 %v946, 0.0
      %v953 = vmax.f32 %v947, 0.0
      %v954 = vmax.f32 %v948, 0.0
      %v955 = vmax.f32 %v949, 0.0
      %v962 = vcombine.low %v950, %v951
      %v963 = vcombine.low %v952, %v953
      %v964 = vcombine.low %v954, %v955
      %v966 = vunpack.c.l.s4 1966171168
      %v967 = vunpack.c.0.s8 %v966
      %v968 = vlaneseq
      %v969 = vshrl.u32 %v968, 7
      %v970 = vsub.s32 %v967, %v969
      %v971 = vrot.slane %v962, %v970
      %v973 = vunpack.c.l.s4 1966171168
      %v974 = vunpack.c.0.s8 %v973
      %v975 = vlaneseq
      %v976 = vshrl.u32 %v975, 7
      %v977 = vsub.s32 %v974, %v976
      %v978 = vrot.slane %v963, %v977
      %v980 = vunpack.c.l.s4 1966171168
      %v981 = vunpack.c.0.s8 %v980
      %v982 = vlaneseq
      %v983 = vshrl.u32 %v982, 7
      %v984 = vsub.s32 %v981, %v983
      %v985 = vrot.slane %v964, %v984
      %v986 = vcombine.low %v971, %v978
      %v988 = vunpack.c.l.s4 1966171168
      %v989 = vunpack.c.0.s8 %v988
      %v990 = vlaneseq
      %v991 = vshrl.u32 %v990, 7
      %v992 = vsub.s32 %v989, %v991
      %v993 = vrot.slane %v986, %v992
      %v995 = vunpack.c.l.s4 1966171168
      %v996 = vunpack.c.0.s8 %v995
      %v997 = vlaneseq
      %v998 = vshrl.u32 %v997, 7
      %v999 = vsub.s32 %v996, %v998
      %v1000 = vrot.slane %v985, %v999
      %v1001 = vcombine.low %v993, %v1000
      %v1003 = vlaneseq
      %vm1004 = vcmp.ge.s32.totalorder %v1003, 0
      %vm1005 = vcmp.lt.s32.totalorder %v1003, 768
      %vm1006 = vmand %vm1004, %vm1005
      %1007 = vst.msk [vmem:[%s169] sm:$0x3f] %vm1006, %v1001
      %p1008 = scmp.lt.s32.totalorder %s15, 1
      %s1009 = scalar_select %p1008, %s15, 1
      %s1010 = smul.addr %s1009, 6
      %s1011 = scalar_lea.vmem %s3, %s1010
      // Predicated region
      $region33: #{outconv2d_forward.1} parent=31 // pred_check
        %p1012 = pneg %p101
      $region34: #{outconv2d_forward.1} parent=31 // pred_check_branch
        %1014 = sbr.rel (%p1012) target = $region36
      $region35: #{outconv2d_forward.1} parent=31 // pred_region
        _
      $region36: #{outconv2d_forward.1} parent=31 // pred_fallthru
        _
    $region32: #{outconv2d_forward.1} parent=5 // pred_fallthru
      _
    %p1015 = scmp.le.s32.totalorder 2, %s10
    // Predicated region
    $region37: #{outconv2d_forward.1} parent=5 // pred_check
      %p1016 = pneg %p1015
    $region38: #{outconv2d_forward.1} parent=5 // pred_check_branch
      %1018 = sbr.rel (%p1016) target = $region40
    $region39: #{outconv2d_forward.1} parent=5 // pred_region
      %s1019 = ssub.s32 %s10, 2
      // Predicated region
      $region41: #{outconv2d_forward.1} parent=39 // pred_check
        %p1020 = pneg %p107
      $region42: #{outconv2d_forward.1} parent=39 // pred_check_branch
        %1022 = sbr.rel (%p1020) target = $region44
      $region43: #{outconv2d_forward.1} parent=39 // pred_region
        %p1023 = scmp.lt.s32.totalorder %s16, 1
        %s1024 = scalar_select %p1023, %s16, 1
        %s1025 = smul.addr %s1024, 6
        %s1026 = scalar_lea.vmem %s3, %s1025
      $region44: #{outconv2d_forward.1} parent=39 // pred_fallthru
        _
    $region40: #{outconv2d_forward.1} parent=5 // pred_fallthru
      _
  $region6: #{outconv2d_forward.1} parent=0 // loop_footer
    %s14 = sadd.s32 1, %s10
  $region7: #{outconv2d_forward.1} parent=0 // loop_footer_branch
    %9 = sbr.rel target = $region3
  $region8: #{outconv2d_forward.1} parent=0 // loop_exit
    _

</llo_original>
